<compile_context>
chip_gen: v6e
topology: v6e:2x2x1
jax: 0.10.0
libtpu: 0.0.40
codegen_flags: <defaults>
</compile_context>

<pallas_src>
import jax
import jax.numpy as jnp
from jax.experimental import pallas as pl
from jax.experimental.pallas import tpu as pltpu

# Module __init__ args, baked in as constants.
SIGMA_DATA = 0.5
DYNAMIC_THRESHOLD = 0.0   # -> clip() is the identity.


def _make_kernel(has_mask: bool):
    """EluDiffusion forward for one (batch b, N-tile n) grid step."""

    def kernel(scales_ref, x_ref, noise_ref, *rest):
        if has_mask:
            (mask_ref, cemb_ref, w1_ref, b1_ref, tw_ref, w2_ref, b2_ref,
             loss_ref, msum_ref) = rest
        else:
            (cemb_ref, w1_ref, b1_ref, tw_ref, w2_ref, b2_ref,
             loss_ref) = rest

        b = pl.program_id(0)
        # Per-sample EDM scale table, precomputed in the wrapper (SMEM scalars).
        sigma = scales_ref[b, 0]
        c_skip = scales_ref[b, 1]
        c_out = scales_ref[b, 2]
        c_in = scales_ref[b, 3]
        c_noise = scales_ref[b, 4]
        w_loss = scales_ref[b, 5]

        x = x_ref[0]        # (C, TN)  -- N on the lane axis
        nz = noise_ref[0]   # (C, TN)

        # ---- noising: x_noisy = x + sigma * noise * mask ----
        if has_mask:
            m = mask_ref[0]
            x_noisy = x + (sigma * nz) * m
        else:
            x_noisy = x + sigma * nz

        # ---- denoise_fn: x_pred = net(c_in * x_noisy, c_noise, classes) ----
        x_in = c_in * x_noisy                                        # (C, TN)
        cond = b1_ref[...] + c_noise * tw_ref[...] + cemb_ref[0]     # (Hd, 1)
        h = jnp.dot(w1_ref[...], x_in,
                    preferred_element_type=jnp.float32) + cond       # (Hd, TN)
        h = jnp.maximum(h, 0.0)
        x_pred = jnp.dot(w2_ref[...], h,
                         preferred_element_type=jnp.float32) + b2_ref[...]  # (C, TN)

        # x_denoised = c_skip * x_noisy + c_out * x_pred ; clip(thr=0) == id
        x_den = c_skip * x_noisy + c_out * x_pred

        # ---- weighted squared-error partial for this tile (lane-dense) ----
        diff = x_den - x
        loss_ref[0] = w_loss * jnp.sum(diff * diff, axis=0, keepdims=True)  # (1, TN)
        if has_mask:
            msum_ref[0] = jnp.sum(m, axis=0, keepdims=True)                 # (1, TN)

    return kernel


def _pick_tile(n):
    for cand in (2048, 1024, 512, 256, 128):
        if n >= cand and n % cand == 0:
            return cand
    return n  # small / non-128-divisible N: single full-width tile


def elu_diffusion_forward(x, x_classes, sigmas, noise, params, x_mask=None,
                          sigma_data=SIGMA_DATA):
    """EluDiffusion.forward. x is NCHW; returns the scalar loss (f32)."""
    B, C, H, W = x.shape
    N = H * W
    Hd = params["w1"].shape[0]
    has_mask = x_mask is not None

    # Free layout change: NCHW -> (B, C, N); N (=H*W) lands on the lane axis.
    xk = x.reshape(B, C, N).astype(jnp.float32)
    nk = noise.reshape(B, C, N).astype(jnp.float32)
    if has_mask:
        mk = x_mask.reshape(B, C, N).astype(jnp.float32)

    # --- EDM scale weights + loss weight, precomputed (tiny), sent via SMEM ---
    sig = sigmas.astype(jnp.float32)
    sd2 = jnp.float32(sigma_data * sigma_data)
    s2 = sig * sig
    c_skip = sd2 / (s2 + sd2)
    c_out = sig * sigma_data * jax.lax.rsqrt(s2 + sd2)
    c_in = jax.lax.rsqrt(s2 + sd2)
    c_noise = 0.25 * jnp.log(sig)
    w_loss = (s2 + sd2) / (s2 * sd2)          # (sig^2+sd^2) * (sig*sd)^-2
    scales = jnp.stack([sig, c_skip, c_out, c_in, c_noise, w_loss], axis=1)  # (B, 6)

    cemb = params["emb"][x_classes].astype(jnp.float32).reshape(B, Hd, 1)

    TN = _pick_tile(N)
    NT = N // TN

    tile_map = lambda b, n, _s: (b, 0, n)
    const_map = lambda b, n, _s: (0, 0)

    in_specs = [pl.BlockSpec((1, C, TN), tile_map),               # x
                pl.BlockSpec((1, C, TN), tile_map)]               # noise
    inputs = [xk, nk]
    if has_mask:
        in_specs.append(pl.BlockSpec((1, C, TN), tile_map))       # mask
        inputs.append(mk)
    in_specs += [
        pl.BlockSpec((1, Hd, 1), lambda b, n, _s: (b, 0, 0)),     # class embedding
        pl.BlockSpec((Hd, C), const_map),                         # w1
        pl.BlockSpec((Hd, 1), const_map),                         # b1
        pl.BlockSpec((Hd, 1), const_map),                         # tw (time cond)
        pl.BlockSpec((C, Hd), const_map),                         # w2
        pl.BlockSpec((C, 1), const_map),                          # b2
    ]
    inputs += [cemb, params["w1"], params["b1"], params["tw"],
               params["w2"], params["b2"]]

    # Lane-dense per-(b, tile) partial outputs; reduced in the wrapper so both
    # grid axes can be "parallel" (megacore-shardable on v7x).
    part_shape = jax.ShapeDtypeStruct((B * NT, 1, TN), jnp.float32)
    part_spec = pl.BlockSpec((1, 1, TN), lambda b, n, _s: (b * NT + n, 0, 0))
    if has_mask:
        out_shape = (part_shape, part_shape)
        out_specs = (part_spec, part_spec)
    else:
        out_shape = (part_shape,)
        out_specs = (part_spec,)

    grid_spec = pltpu.PrefetchScalarGridSpec(
        num_scalar_prefetch=1,
        grid=(B, NT),
        in_specs=in_specs,
        out_specs=out_specs,
    )

    outs = pl.pallas_call(
        _make_kernel(has_mask),
        out_shape=out_shape,
        grid_spec=grid_spec,
        compiler_params=pltpu.CompilerParams(
            dimension_semantics=("parallel", "parallel")),
    )(scales, *inputs)

    loss_part = outs[0]
    if has_mask:
        mask_total = jnp.sum(outs[1])
    else:
        mask_total = jnp.float32(B * C * N)   # torch.ones(x.size()).sum()

    # losses_b = sum((x_den-x)^2) * loss_weight_b ; / torch.sum(x_mask) ; mean_b
    return jnp.sum(loss_part) / mask_total / jnp.float32(B)


# ---------------- pure-JAX reference (for correctness check) ----------------
def _ref_forward(x, x_classes, sigmas, noise, params, x_mask=None,
                 sigma_data=SIGMA_DATA):
    B, C, H, W = x.shape
    if x_mask is None:
        x_mask = jnp.ones_like(x)
    sig4 = sigmas.reshape(B, 1, 1, 1)
    sd2 = sigma_data * sigma_data
    x_noisy = x + sig4 * noise * x_mask
    c_skip = sd2 / (sig4 ** 2 + sd2)
    c_out = sig4 * sigma_data / jnp.sqrt(sig4 ** 2 + sd2)
    c_in = 1.0 / jnp.sqrt(sig4 ** 2 + sd2)
    c_noise = 0.25 * jnp.log(sigmas)                     # (B,)

    x_in = (c_in * x_noisy).reshape(B, C, H * W)         # (B, C, N)
    cond = (params["b1"][None] + c_noise[:, None, None] * params["tw"][None]
            + params["emb"][x_classes][:, :, None])      # (B, Hd, 1)
    h = jnp.einsum("hc,bcn->bhn", params["w1"], x_in,
                   precision=jax.lax.Precision.HIGHEST) + cond
    h = jnp.maximum(h, 0.0)
    x_pred = (jnp.einsum("ch,bhn->bcn", params["w2"], h,
                         precision=jax.lax.Precision.HIGHEST)
              + params["b2"][None]).reshape(B, C, H, W)

    x_den = c_skip * x_noisy + c_out * x_pred
    losses = jnp.sum((x_den - x) ** 2, axis=(1, 2, 3))   # (B,)
    w = (sigmas ** 2 + sd2) / (sigmas * sigma_data) ** 2
    losses = losses * w / jnp.sum(x_mask)
    return jnp.mean(losses)


if __name__ == "__main__":
    key = jax.random.PRNGKey(0)
    B, C, H, W = 2, 4, 16, 16
    HID, NCLS = 32, 10
    ks = jax.random.split(key, 8)

    x = jax.random.normal(ks[0], (B, C, H, W), jnp.float32)
    x_classes = jax.random.randint(ks[1], (B,), 0, NCLS)
    # distribution(num_samples=B): EDM log-normal sigma sampler (glue, sigma > 0).
    sigmas = jnp.exp(-1.2 + 1.2 * jax.random.normal(ks[2], (B,), jnp.float32))
    # noise = torch.randn_like(x) (glue).
    noise = jax.random.normal(ks[3], (B, C, H, W), jnp.float32)

    # Deterministic synthetic `net` parameters (per-position channel-mixing MLP).
    params = dict(
        emb=0.1 * jax.random.normal(ks[4], (NCLS, HID), jnp.float32),
        w1=0.1 * jax.random.normal(ks[5], (HID, C), jnp.float32),
        b1=jnp.zeros((HID, 1), jnp.float32),
        tw=0.01 * jax.random.normal(ks[6], (HID, 1), jnp.float32),
        w2=0.1 * jax.random.normal(ks[7], (C, HID), jnp.float32),
        b2=jnp.zeros((C, 1), jnp.float32),
    )

    # Fast path: x_mask is None (no mask HBM stream at all).
    loss = elu_diffusion_forward(x, x_classes, sigmas, noise, params, x_mask=None)
    jax.block_until_ready(loss)
    ref = _ref_forward(x, x_classes, sigmas, noise, params, x_mask=None)
    assert jnp.allclose(loss, ref, rtol=2e-2, atol=1e-6), (loss, ref)

    # Masked path.
    mkey = jax.random.fold_in(key, 99)
    x_mask = (jax.random.uniform(mkey, (B, C, H, W)) > 0.2).astype(jnp.float32)
    loss_m = elu_diffusion_forward(x, x_classes, sigmas, noise, params, x_mask=x_mask)
    jax.block_until_ready(loss_m)
    ref_m = _ref_forward(x, x_classes, sigmas, noise, params, x_mask=x_mask)
    assert jnp.allclose(loss_m, ref_m, rtol=2e-2, atol=1e-6), (loss_m, ref_m)

    print("KERNEL_OK")
</pallas_src>

<mosaic_0001>
module attributes {stable_mosaic.version = 11 : i64} {
  func.func @kernel(%arg0: i32, %arg1: i32, %arg2: memref<2x6xf32, #tpu.memory_space<smem>>, %arg3: memref<1x4x256xf32, #tpu.memory_space<vmem>>, %arg4: memref<1x4x256xf32, #tpu.memory_space<vmem>>, %arg5: memref<1x32x1xf32, #tpu.memory_space<vmem>>, %arg6: memref<32x4xf32, #tpu.memory_space<vmem>>, %arg7: memref<32x1xf32, #tpu.memory_space<vmem>>, %arg8: memref<32x1xf32, #tpu.memory_space<vmem>>, %arg9: memref<4x32xf32, #tpu.memory_space<vmem>>, %arg10: memref<4x1xf32, #tpu.memory_space<vmem>>, %arg11: memref<1x1x256xf32, #tpu.memory_space<vmem>>) attributes {dimension_semantics = [#tpu.dimension_semantics<parallel>, #tpu.dimension_semantics<parallel>], iteration_bounds = array<i64: 2, 1>, scalar_prefetch = 1 : i64, scratch_operands = 0 : i64, tpu.core_type = #tpu.core_type<tc>, window_params = [{transform_indices = @transform_0, window_bounds = array<i64: 1, 4, 256>}, {transform_indices = @transform_1, window_bounds = array<i64: 1, 4, 256>}, {transform_indices = @transform_2, window_bounds = array<i64: 1, 32, 1>}, {pipeline_mode = #tpu.pipeline_mode<synchronous>, transform_indices = @transform_3, window_bounds = array<i64: 32, 4>}, {pipeline_mode = #tpu.pipeline_mode<synchronous>, transform_indices = @transform_4, window_bounds = array<i64: 32, 1>}, {pipeline_mode = #tpu.pipeline_mode<synchronous>, transform_indices = @transform_5, window_bounds = array<i64: 32, 1>}, {pipeline_mode = #tpu.pipeline_mode<synchronous>, transform_indices = @transform_6, window_bounds = array<i64: 4, 32>}, {pipeline_mode = #tpu.pipeline_mode<synchronous>, transform_indices = @transform_7, window_bounds = array<i64: 4, 1>}, {transform_indices = @transform_8, window_bounds = array<i64: 1, 1, 256>}]} {
    %0 = arith.index_cast %arg0 : i32 to index
    %c0 = arith.constant 0 : index
    %1 = memref.load %arg2[%0, %c0] : memref<2x6xf32, #tpu.memory_space<smem>>
    %2 = arith.index_cast %arg0 : i32 to index
    %c1 = arith.constant 1 : index
    %3 = memref.load %arg2[%2, %c1] : memref<2x6xf32, #tpu.memory_space<smem>>
    %4 = arith.index_cast %arg0 : i32 to index
    %c2 = arith.constant 2 : index
    %5 = memref.load %arg2[%4, %c2] : memref<2x6xf32, #tpu.memory_space<smem>>
    %6 = arith.index_cast %arg0 : i32 to index
    %c3 = arith.constant 3 : index
    %7 = memref.load %arg2[%6, %c3] : memref<2x6xf32, #tpu.memory_space<smem>>
    %8 = arith.index_cast %arg0 : i32 to index
    %c4 = arith.constant 4 : index
    %9 = memref.load %arg2[%8, %c4] : memref<2x6xf32, #tpu.memory_space<smem>>
    %10 = arith.index_cast %arg0 : i32 to index
    %c5 = arith.constant 5 : index
    %11 = memref.load %arg2[%10, %c5] : memref<2x6xf32, #tpu.memory_space<smem>>
    %c0_0 = arith.constant 0 : index
    %c0_1 = arith.constant 0 : index
    %c0_2 = arith.constant 0 : index
    %12 = vector.load %arg3[%c0_0, %c0_1, %c0_2] : memref<1x4x256xf32, #tpu.memory_space<vmem>>, vector<1x4x256xf32>
    %13 = vector.shape_cast %12 : vector<1x4x256xf32> to vector<4x256xf32>
    %c0_3 = arith.constant 0 : index
    %c0_4 = arith.constant 0 : index
    %c0_5 = arith.constant 0 : index
    %14 = vector.load %arg4[%c0_3, %c0_4, %c0_5] : memref<1x4x256xf32, #tpu.memory_space<vmem>>, vector<1x4x256xf32>
    %15 = vector.shape_cast %14 : vector<1x4x256xf32> to vector<4x256xf32>
    %16 = vector.broadcast %1 : f32 to vector<4x256xf32>
    %17 = arith.mulf %16, %15 : vector<4x256xf32>
    %18 = arith.addf %13, %17 : vector<4x256xf32>
    %19 = vector.broadcast %7 : f32 to vector<4x256xf32>
    %20 = arith.mulf %19, %18 : vector<4x256xf32>
    %c0_6 = arith.constant 0 : index
    %c0_7 = arith.constant 0 : index
    %21 = vector.load %arg7[%c0_6, %c0_7] : memref<32x1xf32, #tpu.memory_space<vmem>>, vector<32x1xf32>
    %c0_8 = arith.constant 0 : index
    %c0_9 = arith.constant 0 : index
    %22 = vector.load %arg8[%c0_8, %c0_9] : memref<32x1xf32, #tpu.memory_space<vmem>>, vector<32x1xf32>
    %23 = vector.broadcast %9 : f32 to vector<32x1xf32>
    %24 = arith.mulf %23, %22 : vector<32x1xf32>
    %25 = arith.addf %21, %24 : vector<32x1xf32>
    %c0_10 = arith.constant 0 : index
    %c0_11 = arith.constant 0 : index
    %c0_12 = arith.constant 0 : index
    %26 = vector.load %arg5[%c0_10, %c0_11, %c0_12] : memref<1x32x1xf32, #tpu.memory_space<vmem>>, vector<1x32x1xf32>
    %27 = vector.shape_cast %26 : vector<1x32x1xf32> to vector<32x1xf32>
    %28 = arith.addf %25, %27 : vector<32x1xf32>
    %c0_13 = arith.constant 0 : index
    %c0_14 = arith.constant 0 : index
    %29 = vector.load %arg6[%c0_13, %c0_14] : memref<32x4xf32, #tpu.memory_space<vmem>>, vector<32x4xf32>
    %cst = arith.constant dense<0.000000e+00> : vector<32x256xf32>
    %30 = tpu.matmul %29, %20, %cst {dimension_numbers = #tpu.dot_dimension_numbers<[1], [0], [0], [1], [0, 0, 1, 1], [], []>} : vector<32x4xf32>, vector<4x256xf32>, vector<32x256xf32> -> vector<32x256xf32>
    %31 = vector.broadcast %28 : vector<32x1xf32> to vector<32x256xf32>
    %32 = arith.addf %30, %31 : vector<32x256xf32>
    %cst_15 = arith.constant 0.000000e+00 : f32
    %33 = vector.broadcast %cst_15 : f32 to vector<32x256xf32>
    %34 = arith.maximumf %32, %33 : vector<32x256xf32>
    %c0_16 = arith.constant 0 : index
    %c0_17 = arith.constant 0 : index
    %35 = vector.load %arg9[%c0_16, %c0_17] : memref<4x32xf32, #tpu.memory_space<vmem>>, vector<4x32xf32>
    %cst_18 = arith.constant dense<0.000000e+00> : vector<4x256xf32>
    %36 = tpu.matmul %35, %34, %cst_18 {dimension_numbers = #tpu.dot_dimension_numbers<[1], [0], [0], [1], [0, 0, 1, 1], [], []>} : vector<4x32xf32>, vector<32x256xf32>, vector<4x256xf32> -> vector<4x256xf32>
    %c0_19 = arith.constant 0 : index
    %c0_20 = arith.constant 0 : index
    %37 = vector.load %arg10[%c0_19, %c0_20] : memref<4x1xf32, #tpu.memory_space<vmem>>, vector<4x1xf32>
    %38 = vector.broadcast %37 : vector<4x1xf32> to vector<4x256xf32>
    %39 = arith.addf %36, %38 : vector<4x256xf32>
    %40 = vector.broadcast %3 : f32 to vector<4x256xf32>
    %41 = arith.mulf %40, %18 : vector<4x256xf32>
    %42 = vector.broadcast %5 : f32 to vector<4x256xf32>
    %43 = arith.mulf %42, %39 : vector<4x256xf32>
    %44 = arith.addf %41, %43 : vector<4x256xf32>
    %45 = arith.subf %44, %13 : vector<4x256xf32>
    %46 = arith.mulf %45, %45 : vector<4x256xf32>
    %cst_21 = arith.constant dense<0.000000e+00> : vector<256xf32>
    %47 = vector.multi_reduction <add>, %46, %cst_21 [0] : vector<4x256xf32> to vector<256xf32>
    %48 = vector.shape_cast %47 : vector<256xf32> to vector<1x256xf32>
    %49 = vector.broadcast %11 : f32 to vector<1x256xf32>
    %50 = arith.mulf %49, %48 : vector<1x256xf32>
    %c0_22 = arith.constant 0 : index
    %c0_23 = arith.constant 0 : index
    %c0_24 = arith.constant 0 : index
    %51 = vector.load %arg11[%c0_22, %c0_23, %c0_24] : memref<1x1x256xf32, #tpu.memory_space<vmem>>, vector<1x1x256xf32>
    %52 = vector.shape_cast %51 : vector<1x1x256xf32> to vector<1x256xf32>
    %53 = vector.shape_cast %50 : vector<1x256xf32> to vector<1x1x256xf32>
    tpu.vector_store %arg11[%c0_22, %c0_23, %c0_24], %53 {strides = array<i32>} : memref<1x1x256xf32, #tpu.memory_space<vmem>>, vector<1x1x256xf32>,
    return
  }
  func.func @transform_0(%arg0: i32, %arg1: i32, %arg2: memref<2x6xf32, #tpu.memory_space<smem>>) -> (i32, i32, i32) {
    %c0_i32 = arith.constant 0 : i32
    %c0_i32_0 = arith.constant 0 : i32
    return %arg0, %c0_i32, %arg1 : i32, i32, i32
  }
  func.func @transform_1(%arg0: i32, %arg1: i32, %arg2: memref<2x6xf32, #tpu.memory_space<smem>>) -> (i32, i32, i32) {
    %c0_i32 = arith.constant 0 : i32
    %c0_i32_0 = arith.constant 0 : i32
    return %arg0, %c0_i32, %arg1 : i32, i32, i32
  }
  func.func @transform_2(%arg0: i32, %arg1: i32, %arg2: memref<2x6xf32, #tpu.memory_space<smem>>) -> (i32, i32, i32) {
    %c0_i32 = arith.constant 0 : i32
    %c0_i32_0 = arith.constant 0 : i32
    %c0_i32_1 = arith.constant 0 : i32
    return %arg0, %c0_i32, %c0_i32_0 : i32, i32, i32
  }
  func.func @transform_3(%arg0: i32, %arg1: i32, %arg2: memref<2x6xf32, #tpu.memory_space<smem>>) -> (i32, i32) {
    %c0_i32 = arith.constant 0 : i32
    %c0_i32_0 = arith.constant 0 : i32
    %c0_i32_1 = arith.constant 0 : i32
    return %c0_i32, %c0_i32_0 : i32, i32
  }
  func.func @transform_4(%arg0: i32, %arg1: i32, %arg2: memref<2x6xf32, #tpu.memory_space<smem>>) -> (i32, i32) {
    %c0_i32 = arith.constant 0 : i32
    %c0_i32_0 = arith.constant 0 : i32
    %c0_i32_1 = arith.constant 0 : i32
    return %c0_i32, %c0_i32_0 : i32, i32
  }
  func.func @transform_5(%arg0: i32, %arg1: i32, %arg2: memref<2x6xf32, #tpu.memory_space<smem>>) -> (i32, i32) {
    %c0_i32 = arith.constant 0 : i32
    %c0_i32_0 = arith.constant 0 : i32
    %c0_i32_1 = arith.constant 0 : i32
    return %c0_i32, %c0_i32_0 : i32, i32
  }
  func.func @transform_6(%arg0: i32, %arg1: i32, %arg2: memref<2x6xf32, #tpu.memory_space<smem>>) -> (i32, i32) {
    %c0_i32 = arith.constant 0 : i32
    %c0_i32_0 = arith.constant 0 : i32
    %c0_i32_1 = arith.constant 0 : i32
    return %c0_i32, %c0_i32_0 : i32, i32
  }
  func.func @transform_7(%arg0: i32, %arg1: i32, %arg2: memref<2x6xf32, #tpu.memory_space<smem>>) -> (i32, i32) {
    %c0_i32 = arith.constant 0 : i32
    %c0_i32_0 = arith.constant 0 : i32
    %c0_i32_1 = arith.constant 0 : i32
    return %c0_i32, %c0_i32_0 : i32, i32
  }
  func.func @transform_8(%arg0: i32, %arg1: i32, %arg2: memref<2x6xf32, #tpu.memory_space<smem>>) -> (i32, i32, i32) {
    %c1_i32 = arith.constant 1 : i32
    %0 = arith.muli %arg0, %c1_i32 : i32
    %1 = arith.addi %0, %arg1 : i32
    %c0_i32 = arith.constant 0 : i32
    %c0_i32_0 = arith.constant 0 : i32
    %c0_i32_1 = arith.constant 0 : i32
    return %1, %c0_i32, %c0_i32_0 : i32, i32, i32
  }
}

</mosaic_0001>

<llo_original>
// kernel: tpu_custom_call.1
$region0: #{tpu_custom_call.1}
  #allocation0 [shape = 'u32[]', space=smem, size = 0x4, offset = 0x4, fixed_abs, tag = 'smem constant byte address 0x4 - core index']
  #allocation1 [shape = 'u32[144,128]{1,0:T(1,128)}', space=vmem, size = 0x12000, scoped, tag = 'internal scratch']
  #allocation2 [shape = 's32[1]{0}', space=sflag, size = 0x4, scoped, tag = 'scoped memory for tpu_custom_call.1']
  #allocation3 [shape = 'u8[1024]{0}', space=smem, size = 0x400, scoped, tag = 'prefetched SMEM operand 0']
  %s0 = inlined_call_operand.vmem [shape: f32[2,6], index: 0, kind: input, shape index: {}]
  %s1 = inlined_call_operand.vmem [shape: f32[2,4,256], index: 1, kind: input, shape index: {}]
  %s2 = inlined_call_operand.vmem [shape: f32[2,4,256], index: 2, kind: input, shape index: {}]
  %s3 = inlined_call_operand.vmem [shape: f32[2,32,1], index: 3, kind: input, shape index: {}]
  %s4 = inlined_call_operand.vmem [shape: f32[32,4], index: 4, kind: input, shape index: {}]
  %s5 = inlined_call_operand.vmem [shape: f32[32,1], index: 5, kind: input, shape index: {}]
  %s6 = inlined_call_operand.vmem [shape: f32[32,1], index: 6, kind: input, shape index: {}]
  %s7 = inlined_call_operand.vmem [shape: f32[4,32], index: 7, kind: input, shape index: {}]
  %s8 = inlined_call_operand.vmem [shape: f32[4,1], index: 8, kind: input, shape index: {}]
  %s9 = inlined_call_operand.hbm [shape: f32[2,1,256], index: 9, kind: output, shape index: {}]
  %s10 = sld [smem:[#allocation0]]
  $region65: #{tpu_custom_call.1} parent=0
    _
  %s12 = ssub.s32 1, %s10
  %s13 = scalar_select 0, %s12, %s10
  %s14 = sshll.u32 %s0, 4
  %s15 = int_to_ptr.vmem [resolvable:$true] %s14
  %17 = dma.vmem_to_smem %s15, 32, [#allocation3], [#allocation2]
  %18 = dma.done [#allocation2], 32
  %19 = sfence
  $region1: #{tpu_custom_call.1} parent=0
    #allocation4 [shape = 'u8[2048]{0}', space=vmem, size = 0x800, scoped, tag = 'output window, operand 0']
    #allocation5 [shape = 's32[2]{0}', space=sflag, size = 0x8, scoped, tag = 'scoped memory for tpu_custom_call.1']
    %20 = vsyncpa [#allocation5], 0
    %s21 = scalar_lea.sflag [#allocation5], 1
    %22 = vsyncpa %s21, 0
    loop: start=0, step=1, limit=4
    $region2: #{tpu_custom_call.1} parent=1 // loop_pre_header
      _
    $region3: #{tpu_custom_call.1} parent=1 // loop_header
      %s24 = sphi 0, %s28
      %p25 = scmp.ge.s32.totalorder %s24, 4
      %s31 = sphi 0, %s43
      %s32 = sphi 0, %s39
      %s33 = sphi 0, %s31
      %s34 = sphi 0, %s32
      %s35 = sphi 0, %s33
      %s36 = sphi 0, %s34
      %s48 = sphi 0, %s50
      %s51 = sphi 0, %s48
      %s52 = sphi 0, %s51
      %s68 = sphi 0, %s52
      %s76 = sphi 0, %s78
      %s79 = sphi 0, %s76
      %s80 = sphi 0, %s79
      %s96 = sphi 0, %s80
      %s102 = sphi 0, %s104
      %s105 = sphi 0, %s102
      %s106 = sphi 0, %s105
      %s122 = sphi 0, %s106
      %s126 = sphi 0, %s126
      %s128 = sphi 0, %s126
      %s129 = sphi 0, %s128
      %s143 = sphi 0, %s129
      %s147 = sphi 0, %s147
      %s149 = sphi 0, %s147
      %s150 = sphi 0, %s149
      %s164 = sphi 0, %s150
      %s168 = sphi 0, %s168
      %s170 = sphi 0, %s168
      %s171 = sphi 0, %s170
      %s185 = sphi 0, %s171
      %s189 = sphi 0, %s189
      %s191 = sphi 0, %s189
      %s192 = sphi 0, %s191
      %s206 = sphi 0, %s192
      %s210 = sphi 0, %s210
      %s212 = sphi 0, %s210
      %s213 = sphi 0, %s212
      %s227 = sphi 0, %s213
      %s235 = sphi 0, %s237
      %s238 = sphi 0, %s235
      %s239 = sphi 0, %s238
      %s255 = sphi 0, %s239
    $region4: #{tpu_custom_call.1} parent=1 // loop_header_branch
      %27 = sbr.rel (%p25) target = $region8
    $region5: #{tpu_custom_call.1} parent=1 // loop_body
      %s29 = ssub.s32 %s24, 1
      %s30 = ssub.s32 %s24, 2
      %s37 = sadd.s32 1, %s32
      %p38 = scmp.ge.s32.totalorder %s37, 1
      %s39 = scalar_select %p38, 0, %s37
      %s40 = sadd.s32 1, %s31
      %s41 = scalar_select %p38, %s40, %s31
      %p42 = scmp.ge.s32.totalorder %s41, 2
      %s43 = scalar_select %p42, 0, %s41
      %s44 = ssub.s32 %s31, %s43
      %s45 = ssub.s32 %s32, %s39
      %s46 = sor.u32 %s44, %s45
      %p47 = scmp.eq.s32.totalorder %s46, 0
      %s49 = sadd.s32 %s48, 1
      %s50 = scalar_select %p47, %s48, %s49
      %p53 = pneg %p47
      %p54 = scmp.eq.s32.totalorder %s24, 1
      %p55 = por %p53, %p54
      %p56 = scmp.ne.s32.totalorder %s48, %s51
      %p57 = scmp.eq.s32.totalorder %s24, 0
      %p58 = por %p56, %p57
      %p59 = scmp.ne.s32.totalorder %s48, %s51
      %p60 = scmp.eq.s32.totalorder %s29, 1
      %p61 = por %p59, %p60
      %p62 = scmp.ne.s32.totalorder %s51, %s52
      %p63 = scmp.eq.s32.totalorder %s29, 0
      %p64 = por %p62, %p63
      %p65 = scmp.ne.s32.totalorder %s51, %s52
      %p66 = scmp.eq.s32.totalorder %s30, 1
      %p67 = por %p65, %p66
      %p69 = scmp.ne.s32.totalorder %s52, %s68
      %p70 = scmp.eq.s32.totalorder %s30, 0
      %p71 = por %p69, %p70
      %s72 = ssub.s32 %s31, %s43
      %s73 = ssub.s32 %s32, %s39
      %s74 = sor.u32 %s72, %s73
      %p75 = scmp.eq.s32.totalorder %s74, 0
      %s77 = sadd.s32 %s76, 1
      %s78 = scalar_select %p75, %s76, %s77
      %p81 = pneg %p75
      %p82 = scmp.eq.s32.totalorder %s24, 1
      %p83 = por %p81, %p82
      %p84 = scmp.ne.s32.totalorder %s76, %s79
      %p85 = scmp.eq.s32.totalorder %s24, 0
      %p86 = por %p84, %p85
      %p87 = scmp.ne.s32.totalorder %s76, %s79
      %p88 = scmp.eq.s32.totalorder %s29, 1
      %p89 = por %p87, %p88
      %p90 = scmp.ne.s32.totalorder %s79, %s80
      %p91 = scmp.eq.s32.totalorder %s29, 0
      %p92 = por %p90, %p91
      %p93 = scmp.ne.s32.totalorder %s79, %s80
      %p94 = scmp.eq.s32.totalorder %s30, 1
      %p95 = por %p93, %p94
      %p97 = scmp.ne.s32.totalorder %s80, %s96
      %p98 = scmp.eq.s32.totalorder %s30, 0
      %p99 = por %p97, %p98
      %s100 = ssub.s32 %s31, %s43
      %p101 = scmp.eq.s32.totalorder %s100, 0
      %s103 = sadd.s32 %s102, 1
      %s104 = scalar_select %p101, %s102, %s103
      %p107 = pneg %p101
      %p108 = scmp.eq.s32.totalorder %s24, 1
      %p109 = por %p107, %p108
      %p110 = scmp.ne.s32.totalorder %s102, %s105
      %p111 = scmp.eq.s32.totalorder %s24, 0
      %p112 = por %p110, %p111
      %p113 = scmp.ne.s32.totalorder %s102, %s105
      %p114 = scmp.eq.s32.totalorder %s29, 1
      %p115 = por %p113, %p114
      %p116 = scmp.ne.s32.totalorder %s105, %s106
      %p117 = scmp.eq.s32.totalorder %s29, 0
      %p118 = por %p116, %p117
      %p119 = scmp.ne.s32.totalorder %s105, %s106
      %p120 = scmp.eq.s32.totalorder %s30, 1
      %p121 = por %p119, %p120
      %p123 = scmp.ne.s32.totalorder %s106, %s122
      %p124 = scmp.eq.s32.totalorder %s30, 0
      %p125 = por %p123, %p124
      %s127 = sadd.s32 %s126, 1
      %p130 = scmp.eq.s32.totalorder %s24, 1
      %p131 = scmp.ne.s32.totalorder %s126, %s128
      %p132 = scmp.eq.s32.totalorder %s24, 0
      %p133 = por %p131, %p132
      %p134 = scmp.ne.s32.totalorder %s126, %s128
      %p135 = scmp.eq.s32.totalorder %s29, 1
      %p136 = por %p134, %p135
      %p137 = scmp.ne.s32.totalorder %s128, %s129
      %p138 = scmp.eq.s32.totalorder %s29, 0
      %p139 = por %p137, %p138
      %p140 = scmp.ne.s32.totalorder %s128, %s129
      %p141 = scmp.eq.s32.totalorder %s30, 1
      %p142 = por %p140, %p141
      %p144 = scmp.ne.s32.totalorder %s129, %s143
      %p145 = scmp.eq.s32.totalorder %s30, 0
      %p146 = por %p144, %p145
      %s148 = sadd.s32 %s147, 1
      %p151 = scmp.eq.s32.totalorder %s24, 1
      %p152 = scmp.ne.s32.totalorder %s147, %s149
      %p153 = scmp.eq.s32.totalorder %s24, 0
      %p154 = por %p152, %p153
      %p155 = scmp.ne.s32.totalorder %s147, %s149
      %p156 = scmp.eq.s32.totalorder %s29, 1
      %p157 = por %p155, %p156
      %p158 = scmp.ne.s32.totalorder %s149, %s150
      %p159 = scmp.eq.s32.totalorder %s29, 0
      %p160 = por %p158, %p159
      %p161 = scmp.ne.s32.totalorder %s149, %s150
      %p162 = scmp.eq.s32.totalorder %s30, 1
      %p163 = por %p161, %p162
      %p165 = scmp.ne.s32.totalorder %s150, %s164
      %p166 = scmp.eq.s32.totalorder %s30, 0
      %p167 = por %p165, %p166
      %s169 = sadd.s32 %s168, 1
      %p172 = scmp.eq.s32.totalorder %s24, 1
      %p173 = scmp.ne.s32.totalorder %s168, %s170
      %p174 = scmp.eq.s32.totalorder %s24, 0
      %p175 = por %p173, %p174
      %p176 = scmp.ne.s32.totalorder %s168, %s170
      %p177 = scmp.eq.s32.totalorder %s29, 1
      %p178 = por %p176, %p177
      %p179 = scmp.ne.s32.totalorder %s170, %s171
      %p180 = scmp.eq.s32.totalorder %s29, 0
      %p181 = por %p179, %p180
      %p182 = scmp.ne.s32.totalorder %s170, %s171
      %p183 = scmp.eq.s32.totalorder %s30, 1
      %p184 = por %p182, %p183
      %p186 = scmp.ne.s32.totalorder %s171, %s185
      %p187 = scmp.eq.s32.totalorder %s30, 0
      %p188 = por %p186, %p187
      %s190 = sadd.s32 %s189, 1
      %p193 = scmp.eq.s32.totalorder %s24, 1
      %p194 = scmp.ne.s32.totalorder %s189, %s191
      %p195 = scmp.eq.s32.totalorder %s24, 0
      %p196 = por %p194, %p195
      %p197 = scmp.ne.s32.totalorder %s189, %s191
      %p198 = scmp.eq.s32.totalorder %s29, 1
      %p199 = por %p197, %p198
      %p200 = scmp.ne.s32.totalorder %s191, %s192
      %p201 = scmp.eq.s32.totalorder %s29, 0
      %p202 = por %p200, %p201
      %p203 = scmp.ne.s32.totalorder %s191, %s192
      %p204 = scmp.eq.s32.totalorder %s30, 1
      %p205 = por %p203, %p204
      %p207 = scmp.ne.s32.totalorder %s192, %s206
      %p208 = scmp.eq.s32.totalorder %s30, 0
      %p209 = por %p207, %p208
      %s211 = sadd.s32 %s210, 1
      %p214 = scmp.eq.s32.totalorder %s24, 1
      %p215 = scmp.ne.s32.totalorder %s210, %s212
      %p216 = scmp.eq.s32.totalorder %s24, 0
      %p217 = por %p215, %p216
      %p218 = scmp.ne.s32.totalorder %s210, %s212
      %p219 = scmp.eq.s32.totalorder %s29, 1
      %p220 = por %p218, %p219
      %p221 = scmp.ne.s32.totalorder %s212, %s213
      %p222 = scmp.eq.s32.totalorder %s29, 0
      %p223 = por %p221, %p222
      %p224 = scmp.ne.s32.totalorder %s212, %s213
      %p225 = scmp.eq.s32.totalorder %s30, 1
      %p226 = por %p224, %p225
      %p228 = scmp.ne.s32.totalorder %s213, %s227
      %p229 = scmp.eq.s32.totalorder %s30, 0
      %p230 = por %p228, %p229
      %s231 = sadd.s32 %s31, %s32
      %s232 = sadd.s32 %s43, %s39
      %s233 = ssub.s32 %s231, %s232
      %p234 = scmp.eq.s32.totalorder %s233, 0
      %s236 = sadd.s32 %s235, 1
      %s237 = scalar_select %p234, %s235, %s236
      %p240 = pneg %p234
      %p241 = scmp.eq.s32.totalorder %s24, 1
      %p242 = por %p240, %p241
      %p243 = scmp.ne.s32.totalorder %s235, %s238
      %p244 = scmp.eq.s32.totalorder %s24, 0
      %p245 = por %p243, %p244
      %p246 = scmp.ne.s32.totalorder %s235, %s238
      %p247 = scmp.eq.s32.totalorder %s29, 1
      %p248 = por %p246, %p247
      %p249 = scmp.ne.s32.totalorder %s238, %s239
      %p250 = scmp.eq.s32.totalorder %s29, 0
      %p251 = por %p249, %p250
      %p252 = scmp.ne.s32.totalorder %s238, %s239
      %p253 = scmp.eq.s32.totalorder %s30, 1
      %p254 = por %p252, %p253
      %p256 = scmp.ne.s32.totalorder %s239, %s255
      %p257 = scmp.eq.s32.totalorder %s30, 0
      %p258 = por %p256, %p257
      %p259 = scmp.le.s32.totalorder 1, %s24
      %p260 = scmp.lt.s32.totalorder %s24, 3
      %p261 = pnand %p259, %p260
      %p262 = pneg %p261
      // Predicated region
      $region9: #{tpu_custom_call.1} parent=5 // pred_check
        _
      $region10: #{tpu_custom_call.1} parent=5 // pred_check_branch
        %264 = sbr.rel (%p261) target = $region12
      $region11: #{tpu_custom_call.1} parent=5 // pred_region
        %s265 = ssub.s32 %s24, 1
        // Predicated region
        $region13: #{tpu_custom_call.1} parent=11 // pred_check
          %p266 = pneg %p139
        $region14: #{tpu_custom_call.1} parent=11 // pred_check_branch
          %268 = sbr.rel (%p266) target = $region16
        $region15: #{tpu_custom_call.1} parent=11 // pred_region
          _
        $region16: #{tpu_custom_call.1} parent=11 // pred_fallthru
          _
        // Predicated region
        $region17: #{tpu_custom_call.1} parent=11 // pred_check
          %p269 = pneg %p160
        $region18: #{tpu_custom_call.1} parent=11 // pred_check_branch
          %271 = sbr.rel (%p269) target = $region20
        $region19: #{tpu_custom_call.1} parent=11 // pred_region
          _
        $region20: #{tpu_custom_call.1} parent=11 // pred_fallthru
          _
        // Predicated region
        $region21: #{tpu_custom_call.1} parent=11 // pred_check
          %p272 = pneg %p181
        $region22: #{tpu_custom_call.1} parent=11 // pred_check_branch
          %274 = sbr.rel (%p272) target = $region24
        $region23: #{tpu_custom_call.1} parent=11 // pred_region
          _
        $region24: #{tpu_custom_call.1} parent=11 // pred_fallthru
          _
        // Predicated region
        $region25: #{tpu_custom_call.1} parent=11 // pred_check
          %p275 = pneg %p202
        $region26: #{tpu_custom_call.1} parent=11 // pred_check_branch
          %277 = sbr.rel (%p275) target = $region28
        $region27: #{tpu_custom_call.1} parent=11 // pred_region
          _
        $region28: #{tpu_custom_call.1} parent=11 // pred_fallthru
          _
        // Predicated region
        $region29: #{tpu_custom_call.1} parent=11 // pred_check
          %p278 = pneg %p223
        $region30: #{tpu_custom_call.1} parent=11 // pred_check_branch
          %280 = sbr.rel (%p278) target = $region32
        $region31: #{tpu_custom_call.1} parent=11 // pred_region
          _
        $region32: #{tpu_custom_call.1} parent=11 // pred_fallthru
          _
      $region12: #{tpu_custom_call.1} parent=5 // pred_fallthru
        _
      %p281 = scmp.lt.s32.totalorder %s24, 2
      // Predicated region
      $region33: #{tpu_custom_call.1} parent=5 // pred_check
        %p282 = pneg %p281
      $region34: #{tpu_custom_call.1} parent=5 // pred_check_branch
        %284 = sbr.rel (%p282) target = $region36
      $region35: #{tpu_custom_call.1} parent=5 // pred_region
        // Predicated region
        $region37: #{tpu_custom_call.1} parent=35 // pred_check
          %p285 = pneg %p58
        $region38: #{tpu_custom_call.1} parent=35 // pred_check_branch
          %287 = sbr.rel (%p285) target = $region40
        $region39: #{tpu_custom_call.1} parent=35 // pred_region
          %s288 = smul.u32 2, %s32
          %p289 = scmp.lt.s32.totalorder %s31, 1
          %s290 = scalar_select %p289, %s31, 1
          %p291 = scmp.lt.s32.totalorder %s288, 1
          %s292 = scalar_select %p291, %s288, 1
          %s293 = smul.addr %s290, 2
          %s294 = sadd.s32 %s292, %s293
          %s295 = smul.addr %s294, 4
          %s296 = scalar_lea.vmem %s1, %s295
          %s297 = smul.u32 2, %s32
        $region40: #{tpu_custom_call.1} parent=35 // pred_fallthru
          _
        // Predicated region
        $region41: #{tpu_custom_call.1} parent=35 // pred_check
          %p298 = pneg %p86
        $region42: #{tpu_custom_call.1} parent=35 // pred_check_branch
          %300 = sbr.rel (%p298) target = $region44
        $region43: #{tpu_custom_call.1} parent=35 // pred_region
          %s301 = smul.u32 2, %s32
          %p302 = scmp.lt.s32.totalorder %s31, 1
          %s303 = scalar_select %p302, %s31, 1
          %p304 = scmp.lt.s32.totalorder %s301, 1
          %s305 = scalar_select %p304, %s301, 1
          %s306 = smul.addr %s303, 2
          %s307 = sadd.s32 %s305, %s306
          %s308 = smul.addr %s307, 4
          %s309 = scalar_lea.vmem %s2, %s308
          %s310 = smul.u32 2, %s32
        $region44: #{tpu_custom_call.1} parent=35 // pred_fallthru
          _
        // Predicated region
        $region45: #{tpu_custom_call.1} parent=35 // pred_check
          %p311 = pneg %p112
        $region46: #{tpu_custom_call.1} parent=35 // pred_check_branch
          %313 = sbr.rel (%p311) target = $region48
        $region47: #{tpu_custom_call.1} parent=35 // pred_region
          %p314 = scmp.lt.s32.totalorder %s31, 1
          %s315 = scalar_select %p314, %s31, 1
          %s316 = smul.addr %s315, 4
          %s317 = smul.addr %s316, 8
          %s318 = scalar_lea.vmem %s3, %s317
        $region48: #{tpu_custom_call.1} parent=35 // pred_fallthru
          _
      $region36: #{tpu_custom_call.1} parent=5 // pred_fallthru
        _
      %p319 = scmp.le.s32.totalorder 1, %s24
      %p320 = scmp.lt.s32.totalorder %s24, 3
      %p321 = pnand %p319, %p320
      %p322 = pneg %p321
      // Predicated region
      $region49: #{tpu_custom_call.1} parent=5 // pred_check
        _
      $region50: #{tpu_custom_call.1} parent=5 // pred_check_branch
        %324 = sbr.rel (%p321) target = $region52
      $region51: #{tpu_custom_call.1} parent=5 // pred_region
        %s325 = ssub.s32 %s24, 1
        %s326 = smul.u32 2, %s34
        %p327 = scmp.lt.s32.totalorder %s33, 1
        %s328 = scalar_select %p327, %s33, 1
        %p329 = scmp.lt.s32.totalorder %s326, 1
        %s330 = scalar_select %p329, %s326, 1
        %s331 = smul.addr %s328, 2
        %s332 = sadd.s32 %s330, %s331
        %s333 = smul.addr %s332, 4
        %s334 = scalar_lea.vmem %s1, %s333
        %p335 = pneg %p64
        %p336 = pneg %p61
        %s337 = smul.u32 2, %s34
        %p338 = scmp.lt.s32.totalorder %s33, 1
        %s339 = scalar_select %p338, %s33, 1
        %p340 = scmp.lt.s32.totalorder %s337, 1
        %s341 = scalar_select %p340, %s337, 1
        %s342 = smul.addr %s339, 2
        %s343 = sadd.s32 %s341, %s342
        %s344 = smul.addr %s343, 4
        %s345 = scalar_lea.vmem %s2, %s344
        %p346 = pneg %p92
        %p347 = pneg %p89
        %p348 = scmp.lt.s32.totalorder %s33, 1
        %s349 = scalar_select %p348, %s33, 1
        %s350 = smul.addr %s349, 4
        %s351 = smul.addr %s350, 8
        %s352 = scalar_lea.vmem %s3, %s351
        %p353 = pneg %p118
        %p354 = pneg %p115
        %p355 = pneg %p139
        %p356 = pneg %p136
        %p357 = pneg %p160
        %p358 = pneg %p157
        %p359 = pneg %p181
        %p360 = pneg %p178
        %p361 = pneg %p202
        %p362 = pneg %p199
        %p363 = pneg %p223
        %p364 = pneg %p220
        %p365 = pneg %p251
        %p366 = pneg %p248
        %s367 = sand.u32 %s238, 1
        %s368 = scalar_lea.sflag [#allocation5], %s367
        %s369 = sand.u32 %s238, 1
        %s370 = smul.addr %s369, 2
        %s371 = scalar_lea.vmem [#allocation4], %s370
        %s372 = smul.u32 2, %s34
        %p373 = scmp.lt.s32.totalorder %s33, 1
        %s374 = scalar_select %p373, %s33, 1
        %p375 = scmp.lt.s32.totalorder %s372, 1
        %s376 = scalar_select %p375, %s372, 1
        %s377 = smul.addr %s374, 2
        %s378 = sadd.s32 %s376, %s377
        %s379 = smul.addr %s378, 4
        %s380 = scalar_lea.vmem %s1, %s379
        %s381 = smul.u32 2, %s34
        %s382 = smul.u32 2, %s34
        %p383 = scmp.lt.s32.totalorder %s33, 1
        %s384 = scalar_select %p383, %s33, 1
        %p385 = scmp.lt.s32.totalorder %s382, 1
        %s386 = scalar_select %p385, %s382, 1
        %s387 = smul.addr %s384, 2
        %s388 = sadd.s32 %s386, %s387
        %s389 = smul.addr %s388, 4
        %s390 = scalar_lea.vmem %s2, %s389
        %s391 = smul.u32 2, %s34
        %p392 = scmp.lt.s32.totalorder %s33, 1
        %s393 = scalar_select %p392, %s33, 1
        %s394 = smul.addr %s393, 4
        %s395 = smul.addr %s394, 8
        %s396 = scalar_lea.vmem %s3, %s395
        %s397 = sadd.s32 %s33, %s34
        %s398 = smul.u32 %s33, 128
        %s399 = sld [smem:[#allocation3 + %s398]]
        %s400 = sadd.s32 %s398, 1
        %s401 = sld [smem:[#allocation3 + %s400]]
        %s402 = sadd.s32 %s398, 2
        %s403 = sld [smem:[#allocation3 + %s402]]
        %s404 = sadd.s32 %s398, 3
        %s405 = sld [smem:[#allocation3 + %s404]]
        %s406 = sadd.s32 %s398, 4
        %s407 = sld [smem:[#allocation3 + %s406]]
        %s408 = sadd.s32 %s398, 5
        %s409 = sld [smem:[#allocation3 + %s408]]
        %v410 = vld [vmem:[%s380] sm:$0xff]
        %v411 = vld [vmem:[%s390] sm:$0xff]
        %v412 = vstv %s399
        %v413 = vmul.f32 %v412, %v411
        %v414 = vadd.f32 %v410, %v413
        %v415 = vstv %s405
        %v416 = vmul.f32 %v415, %v414
        %v417 = vld [vmem:[%s5] sm:$0xff]
        %v418 = vld [vmem:[%s5 + $0x8] sm:$0xff]
        %v419 = vld [vmem:[%s5 + $0x10] sm:$0xff]
        %v420 = vld [vmem:[%s5 + $0x18] sm:$0xff]
        %v421 = vld [vmem:[%s6] sm:$0xff]
        %v422 = vld [vmem:[%s6 + $0x8] sm:$0xff]
        %v423 = vld [vmem:[%s6 + $0x10] sm:$0xff]
        %v424 = vld [vmem:[%s6 + $0x18] sm:$0xff]
        %v425 = vstv %s407
        %v426 = vmul.f32 %v425, %v421
        %v427 = vmul.f32 %v425, %v422
        %v428 = vmul.f32 %v425, %v423
        %v429 = vmul.f32 %v425, %v424
        %v430 = vadd.f32 %v417, %v426
        %v431 = vadd.f32 %v418, %v427
        %v432 = vadd.f32 %v419, %v428
        %v433 = vadd.f32 %v420, %v429
        %v434 = vld [vmem:[%s396] sm:$0xff]
        %v435 = vld [vmem:[%s396 + $0x8] sm:$0xff]
        %v436 = vld [vmem:[%s396 + $0x10] sm:$0xff]
        %v437 = vld [vmem:[%s396 + $0x18] sm:$0xff]
        %v438 = vadd.f32 %v430, %v434
        %v439 = vadd.f32 %v431, %v435
        %v440 = vadd.f32 %v432, %v436
        %v441 = vadd.f32 %v433, %v437
        %v442 = vld [vmem:[%s4] sm:$0xff]
        %v443 = vld [vmem:[%s4 + $0x8] sm:$0xff]
        %v444 = vld [vmem:[%s4 + $0x10] sm:$0xff]
        %v445 = vld [vmem:[%s4 + $0x18] sm:$0xff]
        %447 = vset.pattern.permute.xlu0 0
        %448 = vperm.xlu0 %447, %v438
        %v449 = vpop.permute.xlu0 %448
        %452 = vset.pattern.permute.xlu0 0
        %453 = vperm.xlu0 %452, %v439
        %v454 = vpop.permute.xlu0 %453
        %457 = vset.pattern.permute.xlu0 0
        %458 = vperm.xlu0 %457, %v440
        %v459 = vpop.permute.xlu0 %458
        %462 = vset.pattern.permute.xlu0 0
        %463 = vperm.xlu0 %462, %v441
        %v464 = vpop.permute.xlu0 %463
        %v467 = vcombine.high %v416, %v416
        %vm468 = vcmask 31744
        %v470 = vsel %vm468, %v442, 0
        %v473 = vsel %vm468, %v443, 0
        %v476 = vsel %vm468, %v444, 0
        %v479 = vsel %vm468, %v445, 0
        %vm481 = vcmask 1043456
        %v482 = vsel %vm481, %v416, 0
        %v484 = vsel %vm481, %v467, 0
        %486 = vmatprep.subr.mxu0 0.0
        %487 = vmatpush1.msra.mxu0 0.0
        %488 = vmatprep.subr.mxu0 0.0
        %489 = vmatpush1.msra.mxu0 0.0
        %490 = vmatprep.subr.mxu0 0.0
        %491 = vmatpush1.msra.mxu0 0.0
        %492 = vmatprep.subr.mxu0 0.0
        %493 = vmatpush1.msra.mxu0 0.0
        %494 = vmatprep.subr.mxu0 0.0
        %495 = vmatpush1.msra.mxu0 0.0
        %496 = vmatprep.subr.mxu0 0.0
        %497 = vmatpush1.msra.mxu0 0.0
        %498 = vmatprep.subr.mxu0 0.0
        %499 = vmatpush1.msra.mxu0 0.0
        %500 = vmatprep.subr.mxu0 0.0
        %501 = vmatpush1.msra.mxu0 0.0
        %502 = vmatprep.subr.mxu0 0.0
        %503 = vmatpush1.msra.mxu0 0.0
        %504 = vmatprep.subr.mxu0 0.0
        %505 = vmatpush1.msra.mxu0 0.0
        %506 = vmatprep.subr.mxu0 0.0
        %507 = vmatpush1.msra.mxu0 0.0
        %508 = vmatprep.subr.mxu0 0.0
        %509 = vmatpush1.msra.mxu0 0.0
        %510 = vmatprep.subr.mxu0 0.0
        %511 = vmatpush1.msra.mxu0 0.0
        %512 = vmatprep.subr.mxu0 0.0
        %513 = vmatpush1.msra.mxu0 0.0
        %514 = vmatprep.subr.mxu0 0.0
        %515 = vmatpush1.msra.mxu0 0.0
        %516 = vmatprep.subr.mxu0 %v484
        %517 = vmatpush1.msra.mxu0 %v482
        %518 = vmatprep.subr.mxu0 0.0
        %519 = vmatpush2.msra.mxu0 0.0
        %520 = vmatprep.subr.mxu0 0.0
        %521 = vmatpush2.msra.mxu0 0.0
        %522 = vmatprep.subr.mxu0 0.0
        %523 = vmatpush2.msra.mxu0 0.0
        %524 = vmatprep.subr.mxu0 0.0
        %525 = vmatpush2.msra.mxu0 0.0
        %526 = vmatprep.subr.mxu0 0.0
        %527 = vmatpush2.msra.mxu0 0.0
        %528 = vmatprep.subr.mxu0 0.0
        %529 = vmatpush2.msra.mxu0 0.0
        %530 = vmatprep.subr.mxu0 0.0
        %531 = vmatpush2.msra.mxu0 0.0
        %532 = vmatprep.subr.mxu0 0.0
        %533 = vmatpush2.msra.mxu0 0.0
        %534 = vmatprep.subr.mxu0 0.0
        %535 = vmatpush2.msra.mxu0 0.0
        %536 = vmatprep.subr.mxu0 0.0
        %537 = vmatpush2.msra.mxu0 0.0
        %538 = vmatprep.subr.mxu0 0.0
        %539 = vmatpush2.msra.mxu0 0.0
        %540 = vmatprep.subr.mxu0 0.0
        %541 = vmatpush2.msra.mxu0 0.0
        %542 = vmatprep.subr.mxu0 0.0
        %543 = vmatpush2.msra.mxu0 0.0
        %544 = vmatprep.subr.mxu0 0.0
        %545 = vmatpush2.msra.mxu0 0.0
        %546 = vmatprep.subr.mxu0 0.0
        %547 = vmatpush2.msra.mxu0 0.0
        %548 = vmatprep.subr.mxu0 0.0
        %549 = vmatpush2.msra.mxu0 0.0
        %550 = vmatprep.mubr.f32.mxu0 0.0
        %551 = vmatmul.mubr.f32.gmra.mxu0 %v470
        %v552 = vpop.f32.mrf.mxu0
        %v553 = vadd.f32 %v449, %v552
        %v554 = vpop.f32.mrf.mxu0
        %v555 = vadd.f32 %v449, %v554
        %556 = vmatprep.mubr.f32.mxu0 0.0
        %557 = vmatmul.mubr.f32.gmra.mxu0 %v473
        %v558 = vpop.f32.mrf.mxu0
        %v559 = vadd.f32 %v454, %v558
        %v560 = vpop.f32.mrf.mxu0
        %v561 = vadd.f32 %v454, %v560
        %562 = vmatprep.mubr.f32.mxu0 0.0
        %563 = vmatmul.mubr.f32.gmra.mxu0 %v476
        %v564 = vpop.f32.mrf.mxu0
        %v565 = vadd.f32 %v459, %v564
        %v566 = vpop.f32.mrf.mxu0
        %v567 = vadd.f32 %v459, %v566
        %568 = vmatprep.mubr.f32.mxu0 0.0
        %569 = vmatmul.mubr.f32.gmra.mxu0 %v479
        %v570 = vpop.f32.mrf.mxu0
        %v571 = vadd.f32 %v464, %v570
        %v572 = vpop.f32.mrf.mxu0
        %v573 = vadd.f32 %v464, %v572
        %574 = vdwg.mxu0
        %v575 = vmax.f32 %v553, 0.0
        %v576 = vmax.f32 %v555, 0.0
        %v577 = vmax.f32 %v559, 0.0
        %v578 = vmax.f32 %v561, 0.0
        %v579 = vmax.f32 %v565, 0.0
        %v580 = vmax.f32 %v567, 0.0
        %v581 = vmax.f32 %v571, 0.0
        %v582 = vmax.f32 %v573, 0.0
        %v583 = vld [vmem:[%s7] sm:$0xf]
        %v584 = vld [vmem:[%s8] sm:$0xf]
        %586 = vset.pattern.permute.xlu0 0
        %587 = vperm.xlu0 %586, %v584
        %v588 = vpop.permute.xlu0 %587
        %vm590 = vcmask 261120
        %v592 = vsel %vm590, %v583, 0
        %594 = vmatprep.subr.mxu0 0.0
        %595 = vmatpush1.msra.mxu0 0.0
        %596 = vmatprep.subr.mxu0 0.0
        %597 = vmatpush1.msra.mxu0 0.0
        %598 = vmatprep.subr.mxu0 0.0
        %599 = vmatpush1.msra.mxu0 0.0
        %600 = vmatprep.subr.mxu0 0.0
        %601 = vmatpush1.msra.mxu0 0.0
        %602 = vmatprep.subr.mxu0 0.0
        %603 = vmatpush1.msra.mxu0 0.0
        %604 = vmatprep.subr.mxu0 0.0
        %605 = vmatpush1.msra.mxu0 0.0
        %606 = vmatprep.subr.mxu0 0.0
        %607 = vmatpush1.msra.mxu0 0.0
        %608 = vmatprep.subr.mxu0 0.0
        %609 = vmatpush1.msra.mxu0 0.0
        %610 = vmatprep.subr.mxu0 0.0
        %611 = vmatpush1.msra.mxu0 0.0
        %612 = vmatprep.subr.mxu0 0.0
        %613 = vmatpush1.msra.mxu0 0.0
        %614 = vmatprep.subr.mxu0 0.0
        %615 = vmatpush1.msra.mxu0 0.0
        %616 = vmatprep.subr.mxu0 0.0
        %617 = vmatpush1.msra.mxu0 0.0
        %618 = vmatprep.subr.mxu0 %v582
        %619 = vmatpush1.msra.mxu0 %v581
        %620 = vmatprep.subr.mxu0 %v580
        %621 = vmatpush1.msra.mxu0 %v579
        %622 = vmatprep.subr.mxu0 %v578
        %623 = vmatpush1.msra.mxu0 %v577
        %624 = vmatprep.subr.mxu0 %v576
        %625 = vmatpush1.msra.mxu0 %v575
        %626 = vmatprep.subr.mxu0 0.0
        %627 = vmatpush2.msra.mxu0 0.0
        %628 = vmatprep.subr.mxu0 0.0
        %629 = vmatpush2.msra.mxu0 0.0
        %630 = vmatprep.subr.mxu0 0.0
        %631 = vmatpush2.msra.mxu0 0.0
        %632 = vmatprep.subr.mxu0 0.0
        %633 = vmatpush2.msra.mxu0 0.0
        %634 = vmatprep.subr.mxu0 0.0
        %635 = vmatpush2.msra.mxu0 0.0
        %636 = vmatprep.subr.mxu0 0.0
        %637 = vmatpush2.msra.mxu0 0.0
        %638 = vmatprep.subr.mxu0 0.0
        %639 = vmatpush2.msra.mxu0 0.0
        %640 = vmatprep.subr.mxu0 0.0
        %641 = vmatpush2.msra.mxu0 0.0
        %642 = vmatprep.subr.mxu0 0.0
        %643 = vmatpush2.msra.mxu0 0.0
        %644 = vmatprep.subr.mxu0 0.0
        %645 = vmatpush2.msra.mxu0 0.0
        %646 = vmatprep.subr.mxu0 0.0
        %647 = vmatpush2.msra.mxu0 0.0
        %648 = vmatprep.subr.mxu0 0.0
        %649 = vmatpush2.msra.mxu0 0.0
        %650 = vmatprep.subr.mxu0 0.0
        %651 = vmatpush2.msra.mxu0 0.0
        %652 = vmatprep.subr.mxu0 0.0
        %653 = vmatpush2.msra.mxu0 0.0
        %654 = vmatprep.subr.mxu0 0.0
        %655 = vmatpush2.msra.mxu0 0.0
        %656 = vmatprep.subr.mxu0 0.0
        %657 = vmatpush2.msra.mxu0 0.0
        %658 = vmatprep.mubr.f32.mxu0 0.0
        %659 = vmatmul.mubr.f32.gmra.mxu0 %v592
        %v660 = vpop.f32.mrf.mxu0
        %v661 = vadd.f32 %v588, %v660
        %v662 = vpop.f32.mrf.mxu0
        %v663 = vadd.f32 %v588, %v662
        %664 = vdwg.mxu0
        %v665 = vstv %s401
        %v666 = vmul.f32 %v665, %v414
        %v667 = vstv %s403
        %v668 = vmul.f32 %v667, %v661
        %v669 = vmul.f32 %v667, %v663
        %v672 = vcombine.low %v668, %v669
        %v674 = vadd.f32 %v666, %v672
        %v675 = vsub.f32 %v674, %v410
        %v676 = vmul.f32 %v675, %v675
        %v678 = vcombine.high %v676, %v676
        %v680 = vsel %vm481, %v676, 0.0
        %v681 = vrot.slane %v680, 4
        %v682 = vadd.f32 %v680, %v681
        %v683 = vrot.slane %v682, 2
        %v684 = vadd.f32 %v682, %v683
        %v685 = vrot.slane %v684, 1
        %v686 = vadd.f32 %v684, %v685
        %v687 = vsel %vm481, %v678, 0.0
        %v688 = vrot.slane %v687, 4
        %v689 = vadd.f32 %v687, %v688
        %v690 = vrot.slane %v689, 2
        %v691 = vadd.f32 %v689, %v690
        %v692 = vrot.slane %v691, 1
        %v693 = vadd.f32 %v691, %v692
        %v694 = vstv %s409
        %v695 = vmul.f32 %v694, %v686
        %v696 = vmul.f32 %v694, %v693
        %v699 = vcombine.low %v695, %v696
        %v701 = vunpack.c.l.s4 1966171168
        %v702 = vunpack.c.0.s8 %v701
        %v703 = vlaneseq
        %v704 = vshrl.u32 %v703, 7
        %v705 = vsub.s32 %v702, %v704
        %v706 = vrot.slane %v699, %v705
        %v708 = vunpack.c.l.s4 1966171168
        %v709 = vunpack.c.0.s8 %v708
        %v710 = vlaneseq
        %v711 = vshrl.u32 %v710, 7
        %v712 = vsub.s32 %v709, %v711
        %v713 = vrot.slane %v706, %v712
        %v715 = vlaneseq
        %vm716 = vcmp.ge.s32.totalorder %v715, 0
        %vm717 = vcmp.lt.s32.totalorder %v715, 256
        %vm718 = vmand %vm716, %vm717
        %719 = vst.msk [vmem:[%s371] sm:$0x3] %vm718, %v713
        %s720 = sand.u32 %s238, 1
        %s721 = scalar_lea.sflag [#allocation5], %s720
        %s722 = sand.u32 %s238, 1
        %s723 = smul.addr %s722, 2
        %s724 = scalar_lea.vmem [#allocation4], %s723
        // Predicated region
        $region53: #{tpu_custom_call.1} parent=51 // pred_check
          %p725 = pneg %p248
        $region54: #{tpu_custom_call.1} parent=51 // pred_check_branch
          %727 = sbr.rel (%p725) target = $region56
        $region55: #{tpu_custom_call.1} parent=51 // pred_region
          %s728 = sadd.s32 %s33, %s34
          %s730 = ssub.s32 32, 32
          %731 = vsyncadd %s721, %s730
          %s732 = smul.addr %s728, 2
          %s733 = smul.addr %s732, 16
          %s734 = scalar_lea.hbm %s9, %s733
          %s736 = sshll.u32 %s724, 4
          %s737 = int_to_ptr.vmem [resolvable:$true] %s736
          %739 = dma.vmem_to_hbm [thread:$0]  %s737, 32, %s734, %s721
        $region56: #{tpu_custom_call.1} parent=51 // pred_fallthru
          _
      $region52: #{tpu_custom_call.1} parent=5 // pred_fallthru
        _
      %p740 = scmp.le.s32.totalorder 2, %s24
      // Predicated region
      $region57: #{tpu_custom_call.1} parent=5 // pred_check
        %p741 = pneg %p740
      $region58: #{tpu_custom_call.1} parent=5 // pred_check_branch
        %743 = sbr.rel (%p741) target = $region60
      $region59: #{tpu_custom_call.1} parent=5 // pred_region
        %s744 = ssub.s32 %s24, 2
        // Predicated region
        $region61: #{tpu_custom_call.1} parent=59 // pred_check
          %p745 = pneg %p254
        $region62: #{tpu_custom_call.1} parent=59 // pred_check_branch
          %747 = sbr.rel (%p745) target = $region64
        $region63: #{tpu_custom_call.1} parent=59 // pred_region
          %s748 = sand.u32 %s239, 1
          %s749 = scalar_lea.sflag [#allocation5], %s748
          %s750 = sand.u32 %s239, 1
          %s751 = smul.addr %s750, 2
          %s752 = scalar_lea.vmem [#allocation4], %s751
          %753 = dma.done %s749, 32
        $region64: #{tpu_custom_call.1} parent=59 // pred_fallthru
          _
      $region60: #{tpu_custom_call.1} parent=5 // pred_fallthru
        _
    $region6: #{tpu_custom_call.1} parent=1 // loop_footer
      %s28 = sadd.s32 1, %s24
    $region7: #{tpu_custom_call.1} parent=1 // loop_footer_branch
      %23 = sbr.rel target = $region3
    $region8: #{tpu_custom_call.1} parent=1 // loop_exit
      _
    %754 = vsyncpa [#allocation5], 1
    %s755 = scalar_lea.sflag [#allocation5], 1
    %756 = vsyncpa %s755, 1

</llo_original>
